<compile_context>
chip_gen: v7x
topology: tpu7x:2x2x1
jax: 0.10.0
libtpu: 0.0.40
codegen_flags: <defaults>
</compile_context>

<pallas_src>
import functools

import jax
import jax.numpy as jnp
from jax.experimental import pallas as pl
from jax.experimental.pallas import tpu as pltpu

LINEAR_SIZE = 128
LN_EPS = 1e-5  # PyTorch nn.LayerNorm default


def _round_up(x, m):
    return ((x + m - 1) // m) * m


def _vmem_capacity_bytes():
    """Per-generation VMEM capacity (trace-time query, conservative fallback)."""
    try:
        return int(pltpu.get_tpu_info().vmem_capacity_bytes)
    except Exception:
        return 64 << 20  # v7x per-TensorCore VMEM (smallest of the three gens)


def _choose_batch_tile(bs, d, c_pad, l=LINEAR_SIZE):
    """Derive (batch_tile, vmem_limit_bytes) from problem size + VMEM capacity."""
    cap = _vmem_capacity_bytes()
    budget = int(cap * 0.70)  # headroom for compiler scratch / regalloc spill

    # bf16 weights + f32 biases/LN affine; charged 2x because constant-index
    # inputs are still double-buffered by the default pipeline.
    # (pl.Buffered(1) on those specs would halve this; kept default for
    #  portability and charged to the budget instead.)
    fixed = 2 * ((d * l + l * l + l * c_pad) * 2 + (6 * l + c_pad) * 4)
    # Per batch-row: double-buffered f32 input + f32 output tile, plus the
    # in-kernel bf16 copy of the input row and f32 intermediates.
    per_row = 2 * d * 4 + 2 * c_pad * 4 + d * 2 + 4 * l * 4

    tb = (budget - fixed - (2 << 20)) // per_row
    tb = max(8, min(int(tb), 1024))
    tb = min(tb, _round_up(bs, 8))                     # never bigger than batch
    if bs >= 16:                                       # keep grid >= 2 so the
        tb = min(tb, _round_up(pl.cdiv(bs, 2), 8))     # parallel axis uses both v7x TCs
    tb = max(8, (tb // 8) * 8)                         # sublane multiple

    footprint = fixed + per_row * tb + (2 << 20)
    vmem_limit = max(32 << 20, min(int(cap * 0.85), footprint + (4 << 20)))
    return tb, vmem_limit


def _layernorm(h, gamma, beta):
    # Two-pass LayerNorm in f32 (matches nn.LayerNorm numerics; the extra
    # cross-lane reduce is an XLU op and free in this memory-bound kernel).
    mu = jnp.mean(h, axis=-1, keepdims=True)
    c = h - mu
    var = jnp.mean(c * c, axis=-1, keepdims=True)
    return c * jax.lax.rsqrt(var + LN_EPS) * gamma + beta


def mlp_encoder_kernel(
    x_ref,            # (TB, D)        f32 (native dtype) flattened input tile
    w1_ref, b1_ref,   # (D, 128) bf16, (1, 128) f32
    g1_ref, be1_ref,  # (1, 128) f32   LayerNorm 1 affine
    w2_ref, b2_ref,   # (128, 128) bf16, (1, 128) f32
    g2_ref, be2_ref,  # (1, 128) f32   LayerNorm 2 affine
    w3_ref, b3_ref,   # (128, Cp) bf16, (1, Cp) f32   (Cp = out_channels padded)
    o_ref,            # (TB, Cp)       f32
):
    # encoder[0]: Linear(D -> 128).  bf16 cast happens HERE (cheap VPU op,
    # hidden under the input DMA); MXU matmul with f32 accumulation.
    x = x_ref[...].astype(jnp.bfloat16)
    h = jnp.dot(x, w1_ref[...], preferred_element_type=jnp.float32) + b1_ref[...]
    # encoder[1]: LayerNorm([128]); encoder[2]: ReLU.
    # (LN affine is applied here, NOT folded into w2/b2: the ReLU in between
    #  makes that fold invalid.)
    h = _layernorm(h, g1_ref[...], be1_ref[...])
    h = jnp.maximum(h, 0.0)

    # encoder[3]: Linear(128 -> 128)
    h = jnp.dot(h.astype(jnp.bfloat16), w2_ref[...],
                preferred_element_type=jnp.float32) + b2_ref[...]
    # encoder[4]: LayerNorm([128]); encoder[5]: ReLU
    h = _layernorm(h, g2_ref[...], be2_ref[...])
    h = jnp.maximum(h, 0.0)

    # self.out: Linear(128 -> out_channels); lane-dense (padded) f32 store.
    o_ref[...] = jnp.dot(h.astype(jnp.bfloat16), w3_ref[...],
                         preferred_element_type=jnp.float32) + b3_ref[...]


@functools.partial(jax.jit, static_argnames=("seq_len_future",))
def mlp_encoder_forward(x, params, seq_len_future=3):
    """Replicates MLPEncoderModel.forward.

    x: (bs, channels, seq_len); returns (h, hand_last, head_last)
      h:          (bs, out_channels) float32
      hand_last:  (bs, 6,          seq_len_future)  -- same dtype as x
      head_last:  (bs, channels-6, seq_len_future)  -- same dtype as x
    """
    bs, channels, seq_len = x.shape

    # Glue: slice + broadcast of the last time step (cold path, plain JAX).
    last = x[:, :, -1:]  # (bs, channels, 1)
    hand_last = jnp.broadcast_to(last[:, :6, :], (bs, 6, seq_len_future))
    head_last = jnp.broadcast_to(last[:, 6:, :], (bs, channels - 6, seq_len_future))

    (w1, b1, g1, be1, w2, b2, g2, be2, w3, b3) = params
    out_channels = w3.shape[1]
    D = channels * seq_len
    c_pad = out_channels if out_channels % 128 == 0 else _round_up(out_channels, 128)

    # Exactly h.view(bs, -1): pure reshape, no wrapper-side cast and no pad.
    h_in = x.reshape(bs, D)

    tb, vmem_limit = _choose_batch_tile(bs, D, c_pad)
    grid = (pl.cdiv(bs, tb),)  # ragged last block handled by Pallas

    # bf16 weights for the MXU (tiny, VMEM-resident); biases / LN affine f32.
    w1b = w1.astype(jnp.bfloat16)
    w2b = w2.astype(jnp.bfloat16)
    if c_pad != out_channels:
        w3 = jnp.pad(w3, ((0, 0), (0, c_pad - out_channels)))
        b3 = jnp.pad(b3, ((0, 0), (0, c_pad - out_channels)))
    w3b = w3.astype(jnp.bfloat16)

    tiled = lambda shape: pl.BlockSpec(shape, lambda i: (i, 0))     # batch-tiled
    resident = lambda shape: pl.BlockSpec(shape, lambda i: (0, 0))  # VMEM-resident

    flops = 2 * bs * (D * LINEAR_SIZE + LINEAR_SIZE * LINEAR_SIZE
                      + LINEAR_SIZE * c_pad)
    bytes_accessed = (bs * D * 4 + bs * c_pad * 4
                      + (D * LINEAR_SIZE + LINEAR_SIZE * LINEAR_SIZE
                         + LINEAR_SIZE * c_pad) * 2
                      + (6 * LINEAR_SIZE + c_pad) * 4)

    out = pl.pallas_call(
        mlp_encoder_kernel,
        out_shape=jax.ShapeDtypeStruct((bs, c_pad), jnp.float32),
        grid=grid,
        in_specs=[
            tiled((tb, D)),
            resident((D, LINEAR_SIZE)), resident((1, LINEAR_SIZE)),
            resident((1, LINEAR_SIZE)), resident((1, LINEAR_SIZE)),
            resident((LINEAR_SIZE, LINEAR_SIZE)), resident((1, LINEAR_SIZE)),
            resident((1, LINEAR_SIZE)), resident((1, LINEAR_SIZE)),
            resident((LINEAR_SIZE, c_pad)), resident((1, c_pad)),
        ],
        out_specs=tiled((tb, c_pad)),
        compiler_params=pltpu.CompilerParams(
            dimension_semantics=("parallel",),   # megacore sharding on v7x
            vmem_limit_bytes=vmem_limit,
        ),
        cost_estimate=pl.CostEstimate(
            flops=flops,
            transcendentals=2 * bs,
            bytes_accessed=bytes_accessed,
        ),
    )(h_in, w1b, b1, g1, be1, w2b, b2, g2, be2, w3b, b3)

    h = out if c_pad == out_channels else out[:, :out_channels]
    return h, hand_last, head_last


def init_params(key, in_dim, out_channels):
    """Deterministic synthetic parameter init (not a checkpoint load)."""
    ks = jax.random.split(key, 6)
    scale1 = 1.0 / jnp.sqrt(in_dim)
    scale2 = 1.0 / jnp.sqrt(LINEAR_SIZE)
    w1 = jax.random.uniform(ks[0], (in_dim, LINEAR_SIZE), jnp.float32, -scale1, scale1)
    b1 = jax.random.uniform(ks[1], (1, LINEAR_SIZE), jnp.float32, -scale1, scale1)
    g1 = jnp.ones((1, LINEAR_SIZE), jnp.float32)
    be1 = jnp.zeros((1, LINEAR_SIZE), jnp.float32)
    w2 = jax.random.uniform(ks[2], (LINEAR_SIZE, LINEAR_SIZE), jnp.float32, -scale2, scale2)
    b2 = jax.random.uniform(ks[3], (1, LINEAR_SIZE), jnp.float32, -scale2, scale2)
    g2 = jnp.ones((1, LINEAR_SIZE), jnp.float32)
    be2 = jnp.zeros((1, LINEAR_SIZE), jnp.float32)
    w3 = jax.random.uniform(ks[4], (LINEAR_SIZE, out_channels), jnp.float32, -scale2, scale2)
    b3 = jax.random.uniform(ks[5], (1, out_channels), jnp.float32, -scale2, scale2)
    return (w1, b1, g1, be1, w2, b2, g2, be2, w3, b3)


if __name__ == "__main__":
    # Small config consistent with the module: in_channels=8 (>6 so the head
    # slice is non-empty), seq_len=8, seq_len_future=3, out_channels=32.
    batch, in_channels, seq_len = 2, 8, 8
    seq_len_future, out_channels = 3, 32

    key = jax.random.PRNGKey(0)
    kx, kp = jax.random.split(key)
    x = jax.random.normal(kx, (batch, in_channels, seq_len), dtype=jnp.float32)
    params = init_params(kp, in_channels * seq_len, out_channels)

    h, hand_last, head_last = mlp_encoder_forward(x, params, seq_len_future=seq_len_future)
    jax.block_until_ready((h, hand_last, head_last))

    assert h.shape == (batch, out_channels)
    assert h.dtype == jnp.float32
    assert hand_last.shape == (batch, 6, seq_len_future)
    assert head_last.shape == (batch, in_channels - 6, seq_len_future)
    assert bool(jnp.all(jnp.isfinite(h)))
    print("KERNEL_OK")
</pallas_src>

<mosaic_0001>
module attributes {stable_mosaic.version = 11 : i64} {
  func.func @mlp_encoder_kernel(%arg0: i32, %arg1: memref<8x64xf32, #tpu.memory_space<vmem>>, %arg2: memref<64x128xbf16, #tpu.memory_space<vmem>>, %arg3: memref<1x128xf32, #tpu.memory_space<vmem>>, %arg4: memref<1x128xf32, #tpu.memory_space<vmem>>, %arg5: memref<1x128xf32, #tpu.memory_space<vmem>>, %arg6: memref<128x128xbf16, #tpu.memory_space<vmem>>, %arg7: memref<1x128xf32, #tpu.memory_space<vmem>>, %arg8: memref<1x128xf32, #tpu.memory_space<vmem>>, %arg9: memref<1x128xf32, #tpu.memory_space<vmem>>, %arg10: memref<128x128xbf16, #tpu.memory_space<vmem>>, %arg11: memref<1x128xf32, #tpu.memory_space<vmem>>, %arg12: memref<8x128xf32, #tpu.memory_space<vmem>>) attributes {dimension_semantics = [#tpu.dimension_semantics<parallel>], iteration_bounds = array<i64: 1>, scalar_prefetch = 0 : i64, scratch_operands = 0 : i64, tpu.core_type = #tpu.core_type<tc>, window_params = [{transform_indices = @transform_0, window_bounds = array<i64: 8, 64>}, {pipeline_mode = #tpu.pipeline_mode<synchronous>, transform_indices = @transform_1, window_bounds = array<i64: 64, 128>}, {pipeline_mode = #tpu.pipeline_mode<synchronous>, transform_indices = @transform_2, window_bounds = array<i64: 1, 128>}, {pipeline_mode = #tpu.pipeline_mode<synchronous>, transform_indices = @transform_3, window_bounds = array<i64: 1, 128>}, {pipeline_mode = #tpu.pipeline_mode<synchronous>, transform_indices = @transform_4, window_bounds = array<i64: 1, 128>}, {pipeline_mode = #tpu.pipeline_mode<synchronous>, transform_indices = @transform_5, window_bounds = array<i64: 128, 128>}, {pipeline_mode = #tpu.pipeline_mode<synchronous>, transform_indices = @transform_6, window_bounds = array<i64: 1, 128>}, {pipeline_mode = #tpu.pipeline_mode<synchronous>, transform_indices = @transform_7, window_bounds = array<i64: 1, 128>}, {pipeline_mode = #tpu.pipeline_mode<synchronous>, transform_indices = @transform_8, window_bounds = array<i64: 1, 128>}, {pipeline_mode = #tpu.pipeline_mode<synchronous>, transform_indices = @transform_9, window_bounds = array<i64: 128, 128>}, {pipeline_mode = #tpu.pipeline_mode<synchronous>, transform_indices = @transform_10, window_bounds = array<i64: 1, 128>}, {transform_indices = @transform_11, window_bounds = array<i64: 8, 128>}]} {
    %c0 = arith.constant 0 : index
    %c0_0 = arith.constant 0 : index
    %0 = vector.load %arg1[%c0, %c0_0] : memref<8x64xf32, #tpu.memory_space<vmem>>, vector<8x64xf32>
    %1 = arith.truncf %0 : vector<8x64xf32> to vector<8x64xbf16>
    %c0_1 = arith.constant 0 : index
    %c0_2 = arith.constant 0 : index
    %2 = vector.load %arg2[%c0_1, %c0_2] : memref<64x128xbf16, #tpu.memory_space<vmem>>, vector<64x128xbf16>
    %cst = arith.constant dense<0.000000e+00> : vector<8x128xf32>
    %3 = tpu.matmul %1, %2, %cst {dimension_numbers = #tpu.dot_dimension_numbers<[1], [0], [0], [1], [0, 0, 1, 1], [], []>} : vector<8x64xbf16>, vector<64x128xbf16>, vector<8x128xf32> -> vector<8x128xf32>
    %c0_3 = arith.constant 0 : index
    %c0_4 = arith.constant 0 : index
    %4 = vector.load %arg3[%c0_3, %c0_4] : memref<1x128xf32, #tpu.memory_space<vmem>>, vector<1x128xf32>
    %5 = vector.broadcast %4 : vector<1x128xf32> to vector<8x128xf32>
    %6 = arith.addf %3, %5 : vector<8x128xf32>
    %c0_5 = arith.constant 0 : index
    %c0_6 = arith.constant 0 : index
    %7 = vector.load %arg4[%c0_5, %c0_6] : memref<1x128xf32, #tpu.memory_space<vmem>>, vector<1x128xf32>
    %c0_7 = arith.constant 0 : index
    %c0_8 = arith.constant 0 : index
    %8 = vector.load %arg5[%c0_7, %c0_8] : memref<1x128xf32, #tpu.memory_space<vmem>>, vector<1x128xf32>
    %cst_9 = arith.constant dense<0.000000e+00> : vector<8xf32>
    %9 = vector.multi_reduction <add>, %6, %cst_9 [1] : vector<8x128xf32> to vector<8xf32>
    %10 = vector.shape_cast %9 : vector<8xf32> to vector<8x1xf32>
    %cst_10 = arith.constant 1.280000e+02 : f32
    %11 = vector.broadcast %cst_10 : f32 to vector<8x1xf32>
    %12 = arith.divf %10, %11 : vector<8x1xf32>
    %13 = vector.broadcast %12 : vector<8x1xf32> to vector<8x128xf32>
    %14 = arith.subf %6, %13 : vector<8x128xf32>
    %15 = arith.mulf %14, %14 : vector<8x128xf32>
    %cst_11 = arith.constant dense<0.000000e+00> : vector<8xf32>
    %16 = vector.multi_reduction <add>, %15, %cst_11 [1] : vector<8x128xf32> to vector<8xf32>
    %17 = vector.shape_cast %16 : vector<8xf32> to vector<8x1xf32>
    %cst_12 = arith.constant 1.280000e+02 : f32
    %18 = vector.broadcast %cst_12 : f32 to vector<8x1xf32>
    %19 = arith.divf %17, %18 : vector<8x1xf32>
    %cst_13 = arith.constant 9.99999974E-6 : f32
    %20 = vector.broadcast %cst_13 : f32 to vector<8x1xf32>
    %21 = arith.addf %19, %20 : vector<8x1xf32>
    %22 = math.rsqrt %21 : vector<8x1xf32>
    %23 = vector.broadcast %22 : vector<8x1xf32> to vector<8x128xf32>
    %24 = arith.mulf %14, %23 : vector<8x128xf32>
    %25 = vector.broadcast %7 : vector<1x128xf32> to vector<8x128xf32>
    %26 = arith.mulf %24, %25 : vector<8x128xf32>
    %27 = vector.broadcast %8 : vector<1x128xf32> to vector<8x128xf32>
    %28 = arith.addf %26, %27 : vector<8x128xf32>
    %cst_14 = arith.constant 0.000000e+00 : f32
    %29 = vector.broadcast %cst_14 : f32 to vector<8x128xf32>
    %30 = arith.maximumf %28, %29 : vector<8x128xf32>
    %31 = arith.truncf %30 : vector<8x128xf32> to vector<8x128xbf16>
    %c0_15 = arith.constant 0 : index
    %c0_16 = arith.constant 0 : index
    %32 = vector.load %arg6[%c0_15, %c0_16] : memref<128x128xbf16, #tpu.memory_space<vmem>>, vector<128x128xbf16>
    %cst_17 = arith.constant dense<0.000000e+00> : vector<8x128xf32>
    %33 = tpu.matmul %31, %32, %cst_17 {dimension_numbers = #tpu.dot_dimension_numbers<[1], [0], [0], [1], [0, 0, 1, 1], [], []>} : vector<8x128xbf16>, vector<128x128xbf16>, vector<8x128xf32> -> vector<8x128xf32>
    %c0_18 = arith.constant 0 : index
    %c0_19 = arith.constant 0 : index
    %34 = vector.load %arg7[%c0_18, %c0_19] : memref<1x128xf32, #tpu.memory_space<vmem>>, vector<1x128xf32>
    %35 = vector.broadcast %34 : vector<1x128xf32> to vector<8x128xf32>
    %36 = arith.addf %33, %35 : vector<8x128xf32>
    %c0_20 = arith.constant 0 : index
    %c0_21 = arith.constant 0 : index
    %37 = vector.load %arg8[%c0_20, %c0_21] : memref<1x128xf32, #tpu.memory_space<vmem>>, vector<1x128xf32>
    %c0_22 = arith.constant 0 : index
    %c0_23 = arith.constant 0 : index
    %38 = vector.load %arg9[%c0_22, %c0_23] : memref<1x128xf32, #tpu.memory_space<vmem>>, vector<1x128xf32>
    %cst_24 = arith.constant dense<0.000000e+00> : vector<8xf32>
    %39 = vector.multi_reduction <add>, %36, %cst_24 [1] : vector<8x128xf32> to vector<8xf32>
    %40 = vector.shape_cast %39 : vector<8xf32> to vector<8x1xf32>
    %cst_25 = arith.constant 1.280000e+02 : f32
    %41 = vector.broadcast %cst_25 : f32 to vector<8x1xf32>
    %42 = arith.divf %40, %41 : vector<8x1xf32>
    %43 = vector.broadcast %42 : vector<8x1xf32> to vector<8x128xf32>
    %44 = arith.subf %36, %43 : vector<8x128xf32>
    %45 = arith.mulf %44, %44 : vector<8x128xf32>
    %cst_26 = arith.constant dense<0.000000e+00> : vector<8xf32>
    %46 = vector.multi_reduction <add>, %45, %cst_26 [1] : vector<8x128xf32> to vector<8xf32>
    %47 = vector.shape_cast %46 : vector<8xf32> to vector<8x1xf32>
    %cst_27 = arith.constant 1.280000e+02 : f32
    %48 = vector.broadcast %cst_27 : f32 to vector<8x1xf32>
    %49 = arith.divf %47, %48 : vector<8x1xf32>
    %cst_28 = arith.constant 9.99999974E-6 : f32
    %50 = vector.broadcast %cst_28 : f32 to vector<8x1xf32>
    %51 = arith.addf %49, %50 : vector<8x1xf32>
    %52 = math.rsqrt %51 : vector<8x1xf32>
    %53 = vector.broadcast %52 : vector<8x1xf32> to vector<8x128xf32>
    %54 = arith.mulf %44, %53 : vector<8x128xf32>
    %55 = vector.broadcast %37 : vector<1x128xf32> to vector<8x128xf32>
    %56 = arith.mulf %54, %55 : vector<8x128xf32>
    %57 = vector.broadcast %38 : vector<1x128xf32> to vector<8x128xf32>
    %58 = arith.addf %56, %57 : vector<8x128xf32>
    %cst_29 = arith.constant 0.000000e+00 : f32
    %59 = vector.broadcast %cst_29 : f32 to vector<8x128xf32>
    %60 = arith.maximumf %58, %59 : vector<8x128xf32>
    %61 = arith.truncf %60 : vector<8x128xf32> to vector<8x128xbf16>
    %c0_30 = arith.constant 0 : index
    %c0_31 = arith.constant 0 : index
    %62 = vector.load %arg10[%c0_30, %c0_31] : memref<128x128xbf16, #tpu.memory_space<vmem>>, vector<128x128xbf16>
    %cst_32 = arith.constant dense<0.000000e+00> : vector<8x128xf32>
    %63 = tpu.matmul %61, %62, %cst_32 {dimension_numbers = #tpu.dot_dimension_numbers<[1], [0], [0], [1], [0, 0, 1, 1], [], []>} : vector<8x128xbf16>, vector<128x128xbf16>, vector<8x128xf32> -> vector<8x128xf32>
    %c0_33 = arith.constant 0 : index
    %c0_34 = arith.constant 0 : index
    %64 = vector.load %arg11[%c0_33, %c0_34] : memref<1x128xf32, #tpu.memory_space<vmem>>, vector<1x128xf32>
    %65 = vector.broadcast %64 : vector<1x128xf32> to vector<8x128xf32>
    %66 = arith.addf %63, %65 : vector<8x128xf32>
    %c0_35 = arith.constant 0 : index
    %c0_36 = arith.constant 0 : index
    %67 = vector.load %arg12[%c0_35, %c0_36] : memref<8x128xf32, #tpu.memory_space<vmem>>, vector<8x128xf32>
    tpu.vector_store %arg12[%c0_35, %c0_36], %66 {strides = array<i32>} : memref<8x128xf32, #tpu.memory_space<vmem>>, vector<8x128xf32>,
    return
  }
  func.func @transform_0(%arg0: i32) -> (i32, i32) {
    %c0_i32 = arith.constant 0 : i32
    %c0_i32_0 = arith.constant 0 : i32
    return %arg0, %c0_i32 : i32, i32
  }
  func.func @transform_1(%arg0: i32) -> (i32, i32) {
    %c0_i32 = arith.constant 0 : i32
    %c0_i32_0 = arith.constant 0 : i32
    %c0_i32_1 = arith.constant 0 : i32
    return %c0_i32, %c0_i32_0 : i32, i32
  }
  func.func @transform_2(%arg0: i32) -> (i32, i32) {
    %c0_i32 = arith.constant 0 : i32
    %c0_i32_0 = arith.constant 0 : i32
    %c0_i32_1 = arith.constant 0 : i32
    return %c0_i32, %c0_i32_0 : i32, i32
  }
  func.func @transform_3(%arg0: i32) -> (i32, i32) {
    %c0_i32 = arith.constant 0 : i32
    %c0_i32_0 = arith.constant 0 : i32
    %c0_i32_1 = arith.constant 0 : i32
    return %c0_i32, %c0_i32_0 : i32, i32
  }
  func.func @transform_4(%arg0: i32) -> (i32, i32) {
    %c0_i32 = arith.constant 0 : i32
    %c0_i32_0 = arith.constant 0 : i32
    %c0_i32_1 = arith.constant 0 : i32
    return %c0_i32, %c0_i32_0 : i32, i32
  }
  func.func @transform_5(%arg0: i32) -> (i32, i32) {
    %c0_i32 = arith.constant 0 : i32
    %c0_i32_0 = arith.constant 0 : i32
    %c0_i32_1 = arith.constant 0 : i32
    return %c0_i32, %c0_i32_0 : i32, i32
  }
  func.func @transform_6(%arg0: i32) -> (i32, i32) {
    %c0_i32 = arith.constant 0 : i32
    %c0_i32_0 = arith.constant 0 : i32
    %c0_i32_1 = arith.constant 0 : i32
    return %c0_i32, %c0_i32_0 : i32, i32
  }
  func.func @transform_7(%arg0: i32) -> (i32, i32) {
    %c0_i32 = arith.constant 0 : i32
    %c0_i32_0 = arith.constant 0 : i32
    %c0_i32_1 = arith.constant 0 : i32
    return %c0_i32, %c0_i32_0 : i32, i32
  }
  func.func @transform_8(%arg0: i32) -> (i32, i32) {
    %c0_i32 = arith.constant 0 : i32
    %c0_i32_0 = arith.constant 0 : i32
    %c0_i32_1 = arith.constant 0 : i32
    return %c0_i32, %c0_i32_0 : i32, i32
  }
  func.func @transform_9(%arg0: i32) -> (i32, i32) {
    %c0_i32 = arith.constant 0 : i32
    %c0_i32_0 = arith.constant 0 : i32
    %c0_i32_1 = arith.constant 0 : i32
    return %c0_i32, %c0_i32_0 : i32, i32
  }
  func.func @transform_10(%arg0: i32) -> (i32, i32) {
    %c0_i32 = arith.constant 0 : i32
    %c0_i32_0 = arith.constant 0 : i32
    %c0_i32_1 = arith.constant 0 : i32
    return %c0_i32, %c0_i32_0 : i32, i32
  }
  func.func @transform_11(%arg0: i32) -> (i32, i32) {
    %c0_i32 = arith.constant 0 : i32
    %c0_i32_0 = arith.constant 0 : i32
    return %arg0, %c0_i32 : i32, i32
  }
}

</mosaic_0001>

<llo_original>
// kernel: mlp_encoder_forward.1
$region0: #{mlp_encoder_forward.1}
  #allocation0 [shape = 'u32[]', space=smem, size = 0x4, offset = 0x4, fixed_abs, tag = 'smem constant byte address 0x4 - core index']
  #allocation1 [shape = 'u32[144,128]{1,0:T(1,128)}', space=vmem, size = 0x12000, scoped, tag = 'internal scratch']
  %s0 = inlined_call_operand.vmem [shape: f32[2,64], index: 0, kind: input, shape index: {}]
  %s1 = inlined_call_operand.vmem [shape: bf16[64,128], index: 1, kind: input, shape index: {}]
  %s2 = inlined_call_operand.vmem [shape: f32[1,128], index: 2, kind: input, shape index: {}]
  %s3 = inlined_call_operand.vmem [shape: f32[1,128], index: 3, kind: input, shape index: {}]
  %s4 = inlined_call_operand.vmem [shape: f32[1,128], index: 4, kind: input, shape index: {}]
  %s5 = inlined_call_operand.vmem [shape: bf16[128,128], index: 5, kind: input, shape index: {}]
  %s6 = inlined_call_operand.vmem [shape: f32[1,128], index: 6, kind: input, shape index: {}]
  %s7 = inlined_call_operand.vmem [shape: f32[1,128], index: 7, kind: input, shape index: {}]
  %s8 = inlined_call_operand.vmem [shape: f32[1,128], index: 8, kind: input, shape index: {}]
  %s9 = inlined_call_operand.vmem [shape: bf16[128,128], index: 9, kind: input, shape index: {}]
  %s10 = inlined_call_operand.vmem [shape: f32[1,128], index: 10, kind: input, shape index: {}]
  %s11 = inlined_call_operand.hbm [shape: f32[2,128], index: 11, kind: output, shape index: {}]
  %s12 = sld [smem:[#allocation0]]
  $region54: #{mlp_encoder_forward.1} parent=0
    _
  %s14 = ssub.s32 1, %s12
  %s15 = scalar_select 0, %s14, %s12
  $region1: #{mlp_encoder_forward.1} parent=0
    #allocation2 [shape = 'u8[4096]{0}', space=vmem, size = 0x1000, scoped, tag = 'output window, operand 0, single buffered']
    #allocation3 [shape = 's32[1]{0}', space=sflag, size = 0x4, scoped, tag = 'scoped memory for mlp_encoder_forward.1']
    %16 = vsyncpa [#allocation3], 0
    // Predicated region
    $region2: #{mlp_encoder_forward.1} parent=1 // pred_check
      _
    $region3: #{mlp_encoder_forward.1} parent=1 // pred_check_branch
      %18 = sbr.rel (0) target = $region5
    $region4: #{mlp_encoder_forward.1} parent=1 // pred_region
      _
    $region5: #{mlp_encoder_forward.1} parent=1 // pred_fallthru
      _
    // Predicated region
    $region6: #{mlp_encoder_forward.1} parent=1 // pred_check
      _
    $region7: #{mlp_encoder_forward.1} parent=1 // pred_check_branch
      %20 = sbr.rel (0) target = $region9
    $region8: #{mlp_encoder_forward.1} parent=1 // pred_region
      _
    $region9: #{mlp_encoder_forward.1} parent=1 // pred_fallthru
      _
    // Predicated region
    $region10: #{mlp_encoder_forward.1} parent=1 // pred_check
      _
    $region11: #{mlp_encoder_forward.1} parent=1 // pred_check_branch
      %22 = sbr.rel (0) target = $region13
    $region12: #{mlp_encoder_forward.1} parent=1 // pred_region
      _
    $region13: #{mlp_encoder_forward.1} parent=1 // pred_fallthru
      _
    // Predicated region
    $region14: #{mlp_encoder_forward.1} parent=1 // pred_check
      _
    $region15: #{mlp_encoder_forward.1} parent=1 // pred_check_branch
      %24 = sbr.rel (0) target = $region17
    $region16: #{mlp_encoder_forward.1} parent=1 // pred_region
      _
    $region17: #{mlp_encoder_forward.1} parent=1 // pred_fallthru
      _
    // Predicated region
    $region18: #{mlp_encoder_forward.1} parent=1 // pred_check
      _
    $region19: #{mlp_encoder_forward.1} parent=1 // pred_check_branch
      %26 = sbr.rel (0) target = $region21
    $region20: #{mlp_encoder_forward.1} parent=1 // pred_region
      _
    $region21: #{mlp_encoder_forward.1} parent=1 // pred_fallthru
      _
    // Predicated region
    $region22: #{mlp_encoder_forward.1} parent=1 // pred_check
      _
    $region23: #{mlp_encoder_forward.1} parent=1 // pred_check_branch
      %28 = sbr.rel (0) target = $region25
    $region24: #{mlp_encoder_forward.1} parent=1 // pred_region
      _
    $region25: #{mlp_encoder_forward.1} parent=1 // pred_fallthru
      _
    // Predicated region
    $region26: #{mlp_encoder_forward.1} parent=1 // pred_check
      _
    $region27: #{mlp_encoder_forward.1} parent=1 // pred_check_branch
      %30 = sbr.rel (0) target = $region29
    $region28: #{mlp_encoder_forward.1} parent=1 // pred_region
      _
    $region29: #{mlp_encoder_forward.1} parent=1 // pred_fallthru
      _
    // Predicated region
    $region30: #{mlp_encoder_forward.1} parent=1 // pred_check
      _
    $region31: #{mlp_encoder_forward.1} parent=1 // pred_check_branch
      %32 = sbr.rel (0) target = $region33
    $region32: #{mlp_encoder_forward.1} parent=1 // pred_region
      _
    $region33: #{mlp_encoder_forward.1} parent=1 // pred_fallthru
      _
    // Predicated region
    $region34: #{mlp_encoder_forward.1} parent=1 // pred_check
      _
    $region35: #{mlp_encoder_forward.1} parent=1 // pred_check_branch
      %34 = sbr.rel (0) target = $region37
    $region36: #{mlp_encoder_forward.1} parent=1 // pred_region
      _
    $region37: #{mlp_encoder_forward.1} parent=1 // pred_fallthru
      _
    // Predicated region
    $region38: #{mlp_encoder_forward.1} parent=1 // pred_check
      _
    $region39: #{mlp_encoder_forward.1} parent=1 // pred_check_branch
      %36 = sbr.rel (0) target = $region41
    $region40: #{mlp_encoder_forward.1} parent=1 // pred_region
      _
    $region41: #{mlp_encoder_forward.1} parent=1 // pred_fallthru
      _
    // Predicated region
    $region42: #{mlp_encoder_forward.1} parent=1 // pred_check
      _
    $region43: #{mlp_encoder_forward.1} parent=1 // pred_check_branch
      %38 = sbr.rel (0) target = $region45
    $region44: #{mlp_encoder_forward.1} parent=1 // pred_region
      _
    $region45: #{mlp_encoder_forward.1} parent=1 // pred_fallthru
      _
    %v40 = vld [vmem:[%s0] sm:$0xff]
    %v41 = vpack.c.bf16 %v40, %v40
    %v42 = vld [vmem:[%s1] sm:$0xf]
    %v43 = vld [vmem:[%s1 + $0x4] sm:$0xf]
    %v44 = vld [vmem:[%s1 + $0x8] sm:$0xf]
    %v45 = vld [vmem:[%s1 + $0xc] sm:$0xf]
    %v46 = vld [vmem:[%s1 + $0x10] sm:$0xf]
    %v47 = vld [vmem:[%s1 + $0x14] sm:$0xf]
    %v48 = vld [vmem:[%s1 + $0x18] sm:$0xf]
    %v49 = vld [vmem:[%s1 + $0x1c] sm:$0xf]
    %v50 = vld [vmem:[%s2] sm:$0x1]
    %v52 = vlaneseq
    %v53 = vshrl.u32 %v52, 7
    %v54 = vsub.s32 0, %v53
    %v55 = vrot.slane %v50, %v54
    %v65 = vunpack.c.l.b16 %v42
    %v66 = vunpack.c.l.b16 %v43
    %v67 = vunpack.c.l.b16 %v44
    %v68 = vunpack.c.l.b16 %v45
    %v69 = vunpack.c.l.b16 %v46
    %v70 = vunpack.c.l.b16 %v47
    %v71 = vunpack.c.l.b16 %v48
    %v72 = vunpack.c.l.b16 %v49
    %v73 = vpack.c.b16 %v66, %v65
    %v74 = vpack.c.b16 %v68, %v67
    %v75 = vpack.c.b16 %v70, %v69
    %v76 = vpack.c.b16 %v72, %v71
    %vm81 = vcmask 523264
    %v83 = vsel %vm81, %v41, 0
    %85 = vmatprep.subr.bf16.mxu0 0
    %86 = vmatpush1.bf16.msra.mxu0 %v73
    %87 = vmatprep.subr.bf16.mxu0 0
    %88 = vmatpush1.bf16.msra.mxu0 %v74
    %89 = vmatprep.subr.bf16.mxu0 0
    %90 = vmatpush1.bf16.msra.mxu0 %v75
    %91 = vmatprep.subr.bf16.mxu0 0
    %92 = vmatpush1.bf16.msra.mxu0 %v76
    %93 = vmatprep.subr.bf16.mxu0 0
    %94 = vmatpush1.bf16.msra.mxu0 0
    %95 = vmatprep.subr.bf16.mxu0 0
    %96 = vmatpush1.bf16.msra.mxu0 0
    %97 = vmatprep.subr.bf16.mxu0 0
    %98 = vmatpush1.bf16.msra.mxu0 0
    %99 = vmatprep.subr.bf16.mxu0 0
    %100 = vmatpush1.bf16.msra.mxu0 0
    %101 = vmatprep.subr.bf16.mxu0 0
    %102 = vmatpush1.bf16.msra.mxu0 0
    %103 = vmatprep.subr.bf16.mxu0 0
    %104 = vmatpush1.bf16.msra.mxu0 0
    %105 = vmatprep.subr.bf16.mxu0 0
    %106 = vmatpush1.bf16.msra.mxu0 0
    %107 = vmatprep.subr.bf16.mxu0 0
    %108 = vmatpush1.bf16.msra.mxu0 0
    %109 = vmatprep.subr.bf16.mxu0 0
    %110 = vmatpush1.bf16.msra.mxu0 0
    %111 = vmatprep.subr.bf16.mxu0 0
    %112 = vmatpush1.bf16.msra.mxu0 0
    %113 = vmatprep.subr.bf16.mxu0 0
    %114 = vmatpush1.bf16.msra.mxu0 0
    %115 = vmatprep.subr.bf16.mxu0 0
    %116 = vmatpush1.bf16.msra.mxu0 0
    %117 = vmatprep.mubr.bf16.mxu0 0
    %118 = vmatmul.mubr.bf16.gmra.mrb[0].mxu0 %v83
    %v119 = vpop.f32.mrb[0].mxu0
    %v120 = vadd.f32 %v55, %v119
    %v121 = vpop.f32.mrb[0].mxu0
    %v122 = vpop.f32.mrb[0].mxu0
    %v123 = vpop.f32.mrb[0].mxu0
    %124 = vdwg.mxu0
    %v125 = vld [vmem:[%s3] sm:$0x1]
    %v126 = vld [vmem:[%s4] sm:$0x1]
    %127 = vadd.xlane.f32.xlu0 %v120
    %v128 = vpop.xlane.xlu0 %127
    %v129 = vrcp.pop 128.0
    %v130 = vmul.f32 %v128, %v129
    %v131 = vsub.f32 %v120, %v130
    %v132 = vmul.f32 %v131, %v131
    %133 = vadd.xlane.f32.xlu0 %v132
    %v134 = vpop.xlane.xlu0 %133
    %v135 = vmul.f32 %v134, %v129
    %v136 = vadd.f32 %v135, 1e-05
    %v137 = vrsqrt.pop %v136
    %v138 = vmul.f32 %v131, %v137
    %v140 = vlaneseq
    %v141 = vshrl.u32 %v140, 7
    %v142 = vsub.s32 0, %v141
    %v143 = vrot.slane %v125, %v142
    %v145 = vmul.f32 %v138, %v143
    %v147 = vlaneseq
    %v148 = vshrl.u32 %v147, 7
    %v149 = vsub.s32 0, %v148
    %v150 = vrot.slane %v126, %v149
    %v152 = vadd.f32 %v145, %v150
    %v153 = vmax.f32 %v152, 0.0
    %v154 = vpack.c.bf16 %v153, %v153
    %v155 = vld [vmem:[%s5] sm:$0xf]
    %v156 = vld [vmem:[%s5 + $0x4] sm:$0xf]
    %v157 = vld [vmem:[%s5 + $0x8] sm:$0xf]
    %v158 = vld [vmem:[%s5 + $0xc] sm:$0xf]
    %v159 = vld [vmem:[%s5 + $0x10] sm:$0xf]
    %v160 = vld [vmem:[%s5 + $0x14] sm:$0xf]
    %v161 = vld [vmem:[%s5 + $0x18] sm:$0xf]
    %v162 = vld [vmem:[%s5 + $0x1c] sm:$0xf]
    %v163 = vld [vmem:[%s5 + $0x20] sm:$0xf]
    %v164 = vld [vmem:[%s5 + $0x24] sm:$0xf]
    %v165 = vld [vmem:[%s5 + $0x28] sm:$0xf]
    %v166 = vld [vmem:[%s5 + $0x2c] sm:$0xf]
    %v167 = vld [vmem:[%s5 + $0x30] sm:$0xf]
    %v168 = vld [vmem:[%s5 + $0x34] sm:$0xf]
    %v169 = vld [vmem:[%s5 + $0x38] sm:$0xf]
    %v170 = vld [vmem:[%s5 + $0x3c] sm:$0xf]
    %v171 = vld [vmem:[%s6] sm:$0x1]
    %v173 = vlaneseq
    %v174 = vshrl.u32 %v173, 7
    %v175 = vsub.s32 0, %v174
    %v176 = vrot.slane %v171, %v175
    %v194 = vunpack.c.l.b16 %v155
    %v195 = vunpack.c.l.b16 %v156
    %v196 = vunpack.c.l.b16 %v157
    %v197 = vunpack.c.l.b16 %v158
    %v198 = vunpack.c.l.b16 %v159
    %v199 = vunpack.c.l.b16 %v160
    %v200 = vunpack.c.l.b16 %v161
    %v201 = vunpack.c.l.b16 %v162
    %v202 = vunpack.c.l.b16 %v163
    %v203 = vunpack.c.l.b16 %v164
    %v204 = vunpack.c.l.b16 %v165
    %v205 = vunpack.c.l.b16 %v166
    %v206 = vunpack.c.l.b16 %v167
    %v207 = vunpack.c.l.b16 %v168
    %v208 = vunpack.c.l.b16 %v169
    %v209 = vunpack.c.l.b16 %v170
    %v210 = vpack.c.b16 %v195, %v194
    %v211 = vpack.c.b16 %v197, %v196
    %v212 = vpack.c.b16 %v199, %v198
    %v213 = vpack.c.b16 %v201, %v200
    %v214 = vpack.c.b16 %v203, %v202
    %v215 = vpack.c.b16 %v205, %v204
    %v216 = vpack.c.b16 %v207, %v206
    %v217 = vpack.c.b16 %v209, %v208
    %226 = vmatprep.subr.bf16.mxu0 0
    %227 = vmatpush1.bf16.msra.mxu0 %v210
    %228 = vmatprep.subr.bf16.mxu0 0
    %229 = vmatpush1.bf16.msra.mxu0 %v211
    %230 = vmatprep.subr.bf16.mxu0 0
    %231 = vmatpush1.bf16.msra.mxu0 %v212
    %232 = vmatprep.subr.bf16.mxu0 0
    %233 = vmatpush1.bf16.msra.mxu0 %v213
    %234 = vmatprep.subr.bf16.mxu0 0
    %235 = vmatpush1.bf16.msra.mxu0 %v214
    %236 = vmatprep.subr.bf16.mxu0 0
    %237 = vmatpush1.bf16.msra.mxu0 %v215
    %238 = vmatprep.subr.bf16.mxu0 0
    %239 = vmatpush1.bf16.msra.mxu0 %v216
    %240 = vmatprep.subr.bf16.mxu0 0
    %241 = vmatpush1.bf16.msra.mxu0 %v217
    %242 = vmatprep.subr.bf16.mxu0 0
    %243 = vmatpush1.bf16.msra.mxu0 0
    %244 = vmatprep.subr.bf16.mxu0 0
    %245 = vmatpush1.bf16.msra.mxu0 0
    %246 = vmatprep.subr.bf16.mxu0 0
    %247 = vmatpush1.bf16.msra.mxu0 0
    %248 = vmatprep.subr.bf16.mxu0 0
    %249 = vmatpush1.bf16.msra.mxu0 0
    %250 = vmatprep.subr.bf16.mxu0 0
    %251 = vmatpush1.bf16.msra.mxu0 0
    %252 = vmatprep.subr.bf16.mxu0 0
    %253 = vmatpush1.bf16.msra.mxu0 0
    %254 = vmatprep.subr.bf16.mxu0 0
    %255 = vmatpush1.bf16.msra.mxu0 0
    %256 = vmatprep.subr.bf16.mxu0 0
    %257 = vmatpush1.bf16.msra.mxu0 0
    %258 = vmatprep.mubr.bf16.mxu0 0
    %259 = vmatmul.mubr.bf16.gmra.mrb[0].mxu0 %v154
    %v260 = vpop.f32.mrb[0].mxu0
    %v261 = vadd.f32 %v176, %v260
    %v262 = vpop.f32.mrb[0].mxu0
    %v263 = vpop.f32.mrb[0].mxu0
    %v264 = vpop.f32.mrb[0].mxu0
    %265 = vdwg.mxu0
    %v266 = vld [vmem:[%s7] sm:$0x1]
    %v267 = vld [vmem:[%s8] sm:$0x1]
    %268 = vadd.xlane.f32.xlu0 %v261
    %v269 = vpop.xlane.xlu0 %268
    %v270 = vmul.f32 %v269, %v129
    %v271 = vsub.f32 %v261, %v270
    %v272 = vmul.f32 %v271, %v271
    %273 = vadd.xlane.f32.xlu0 %v272
    %v274 = vpop.xlane.xlu0 %273
    %v275 = vmul.f32 %v274, %v129
    %v276 = vadd.f32 %v275, 1e-05
    %v277 = vrsqrt.pop %v276
    %v278 = vmul.f32 %v271, %v277
    %v280 = vlaneseq
    %v281 = vshrl.u32 %v280, 7
    %v282 = vsub.s32 0, %v281
    %v283 = vrot.slane %v266, %v282
    %v285 = vmul.f32 %v278, %v283
    %v287 = vlaneseq
    %v288 = vshrl.u32 %v287, 7
    %v289 = vsub.s32 0, %v288
    %v290 = vrot.slane %v267, %v289
    %v292 = vadd.f32 %v285, %v290
    %v293 = vmax.f32 %v292, 0.0
    %v294 = vpack.c.bf16 %v293, %v293
    %v295 = vld [vmem:[%s9] sm:$0xf]
    %v296 = vld [vmem:[%s9 + $0x4] sm:$0xf]
    %v297 = vld [vmem:[%s9 + $0x8] sm:$0xf]
    %v298 = vld [vmem:[%s9 + $0xc] sm:$0xf]
    %v299 = vld [vmem:[%s9 + $0x10] sm:$0xf]
    %v300 = vld [vmem:[%s9 + $0x14] sm:$0xf]
    %v301 = vld [vmem:[%s9 + $0x18] sm:$0xf]
    %v302 = vld [vmem:[%s9 + $0x1c] sm:$0xf]
    %v303 = vld [vmem:[%s9 + $0x20] sm:$0xf]
    %v304 = vld [vmem:[%s9 + $0x24] sm:$0xf]
    %v305 = vld [vmem:[%s9 + $0x28] sm:$0xf]
    %v306 = vld [vmem:[%s9 + $0x2c] sm:$0xf]
    %v307 = vld [vmem:[%s9 + $0x30] sm:$0xf]
    %v308 = vld [vmem:[%s9 + $0x34] sm:$0xf]
    %v309 = vld [vmem:[%s9 + $0x38] sm:$0xf]
    %v310 = vld [vmem:[%s9 + $0x3c] sm:$0xf]
    %v311 = vld [vmem:[%s10] sm:$0x1]
    %v313 = vlaneseq
    %v314 = vshrl.u32 %v313, 7
    %v315 = vsub.s32 0, %v314
    %v316 = vrot.slane %v311, %v315
    %v334 = vunpack.c.l.b16 %v295
    %v335 = vunpack.c.l.b16 %v296
    %v336 = vunpack.c.l.b16 %v297
    %v337 = vunpack.c.l.b16 %v298
    %v338 = vunpack.c.l.b16 %v299
    %v339 = vunpack.c.l.b16 %v300
    %v340 = vunpack.c.l.b16 %v301
    %v341 = vunpack.c.l.b16 %v302
    %v342 = vunpack.c.l.b16 %v303
    %v343 = vunpack.c.l.b16 %v304
    %v344 = vunpack.c.l.b16 %v305
    %v345 = vunpack.c.l.b16 %v306
    %v346 = vunpack.c.l.b16 %v307
    %v347 = vunpack.c.l.b16 %v308
    %v348 = vunpack.c.l.b16 %v309
    %v349 = vunpack.c.l.b16 %v310
    %v350 = vpack.c.b16 %v335, %v334
    %v351 = vpack.c.b16 %v337, %v336
    %v352 = vpack.c.b16 %v339, %v338
    %v353 = vpack.c.b16 %v341, %v340
    %v354 = vpack.c.b16 %v343, %v342
    %v355 = vpack.c.b16 %v345, %v344
    %v356 = vpack.c.b16 %v347, %v346
    %v357 = vpack.c.b16 %v349, %v348
    %366 = vmatprep.subr.bf16.mxu0 0
    %367 = vmatpush1.bf16.msra.mxu0 %v350
    %368 = vmatprep.subr.bf16.mxu0 0
    %369 = vmatpush1.bf16.msra.mxu0 %v351
    %370 = vmatprep.subr.bf16.mxu0 0
    %371 = vmatpush1.bf16.msra.mxu0 %v352
    %372 = vmatprep.subr.bf16.mxu0 0
    %373 = vmatpush1.bf16.msra.mxu0 %v353
    %374 = vmatprep.subr.bf16.mxu0 0
    %375 = vmatpush1.bf16.msra.mxu0 %v354
    %376 = vmatprep.subr.bf16.mxu0 0
    %377 = vmatpush1.bf16.msra.mxu0 %v355
    %378 = vmatprep.subr.bf16.mxu0 0
    %379 = vmatpush1.bf16.msra.mxu0 %v356
    %380 = vmatprep.subr.bf16.mxu0 0
    %381 = vmatpush1.bf16.msra.mxu0 %v357
    %382 = vmatprep.subr.bf16.mxu0 0
    %383 = vmatpush1.bf16.msra.mxu0 0
    %384 = vmatprep.subr.bf16.mxu0 0
    %385 = vmatpush1.bf16.msra.mxu0 0
    %386 = vmatprep.subr.bf16.mxu0 0
    %387 = vmatpush1.bf16.msra.mxu0 0
    %388 = vmatprep.subr.bf16.mxu0 0
    %389 = vmatpush1.bf16.msra.mxu0 0
    %390 = vmatprep.subr.bf16.mxu0 0
    %391 = vmatpush1.bf16.msra.mxu0 0
    %392 = vmatprep.subr.bf16.mxu0 0
    %393 = vmatpush1.bf16.msra.mxu0 0
    %394 = vmatprep.subr.bf16.mxu0 0
    %395 = vmatpush1.bf16.msra.mxu0 0
    %396 = vmatprep.subr.bf16.mxu0 0
    %397 = vmatpush1.bf16.msra.mxu0 0
    %398 = vmatprep.mubr.bf16.mxu0 0
    %399 = vmatmul.mubr.bf16.gmra.mrb[0].mxu0 %v294
    %v400 = vpop.f32.mrb[0].mxu0
    %v401 = vadd.f32 %v316, %v400
    %v402 = vpop.f32.mrb[0].mxu0
    %v403 = vpop.f32.mrb[0].mxu0
    %v404 = vpop.f32.mrb[0].mxu0
    %405 = vdwg.mxu0
    %406 = vst [vmem:[#allocation2] sm:$0xff] %v401
    // Predicated region
    $region46: #{mlp_encoder_forward.1} parent=1 // pred_check
      _
    $region47: #{mlp_encoder_forward.1} parent=1 // pred_check_branch
      %408 = sbr.rel (0) target = $region49
    $region48: #{mlp_encoder_forward.1} parent=1 // pred_region
      %s410 = ssub.s32 128, 32
      %411 = vsyncadd [#allocation3], %s410
      %s412 = sshll.u32 [#allocation2], 4
      %s413 = int_to_ptr.vmem [resolvable:$true] %s412
      %418 = dma.vmem_to_hbm [thread:$0]  %s413, 32, %s11, [#allocation3], 32, 32, 2
    $region49: #{mlp_encoder_forward.1} parent=1 // pred_fallthru
      _
    // Predicated region
    $region50: #{mlp_encoder_forward.1} parent=1 // pred_check
      _
    $region51: #{mlp_encoder_forward.1} parent=1 // pred_check_branch
      %420 = sbr.rel (0) target = $region53
    $region52: #{mlp_encoder_forward.1} parent=1 // pred_region
      %421 = dma.done [#allocation3], 128
    $region53: #{mlp_encoder_forward.1} parent=1 // pred_fallthru
      _
    %422 = vsyncpa [#allocation3], 1

</llo_original>
